<compile_context>
chip_gen: v7x
topology: tpu7x:2x2x1
jax: 0.10.0
libtpu: 0.0.40
codegen_flags: <defaults>
</compile_context>

<pallas_src>
import jax
import jax.numpy as jnp
from jax.experimental import pallas as pl
from jax.experimental.pallas import tpu as pltpu


def _linear_relu_kernel(x_ref, w_ref, b_ref, o_ref):
    # x_ref: (tm, tk) f32 or bf16    w_ref: (tk, tn) bf16
    # b_ref: (1, tn)  f32            o_ref: (tm, tn) f32 (doubles as accumulator)
    k = pl.program_id(2)

    @pl.when(k == 0)
    def _init():
        o_ref[...] = jnp.zeros_like(o_ref)

    x = x_ref[...].astype(jnp.bfloat16)  # no-op if already bf16
    o_ref[...] += jnp.dot(x, w_ref[...], preferred_element_type=jnp.float32)

    @pl.when(k == pl.num_programs(2) - 1)
    def _finalize():
        y = o_ref[...] + b_ref[...]                       # bias broadcast over rows
        o_ref[...] = jnp.maximum(y, 0.0).astype(o_ref.dtype)   # ReLU


def _pick_tile(dim, preferred, align):
    """Largest multiple of `align` that divides `dim` and is <= `preferred`,
    falling back to the full dimension (always a legal Mosaic block)."""
    if dim % align == 0:
        t = min(preferred, dim)
        t -= t % align
        while t >= align and dim % t != 0:
            t -= align
        if t >= align:
            return t
    # TODO(synk): non-128-aligned large dims fall back to a single full block,
    # which can exceed VMEM; pad inputs upstream if that case matters.
    return dim


def _vmem_capacity_bytes():
    try:
        info = pltpu.get_tpu_info()
        for name in ("vmem_capacity_bytes", "vmem_size_bytes", "vmem_bytes"):
            cap = getattr(info, name, None)
            if cap:
                return int(cap)
    except Exception:
        pass
    return 64 * 1024 * 1024  # conservative default (v7x per-TensorCore VMEM)


def _choose_tiles(B, H_in, H_out, vmem_cap):
    if vmem_cap >= 100 * 1024 * 1024:          # v5e / v6e: 128 MiB VMEM
        tm_pref, tn_pref, tk_pref = 1536, 1536, 512
    else:                                      # v7x: 64 MiB per TensorCore
        tm_pref, tn_pref, tk_pref = 1024, 1024, 512
    tm = _pick_tile(B, tm_pref, 16)            # 16-row aligned works for f32 & bf16
    tn = _pick_tile(H_out, tn_pref, 128)
    tk = _pick_tile(H_in, tk_pref, 128)
    # Keep >= 2 parallel grid iterations when possible so both v7x TensorCores
    # get work; shrink tn (not tm), preserving 128-lane alignment.
    if (B // tm) * (H_out // tn) < 2 and tn % 256 == 0:
        tn //= 2
    return tm, tn, tk


def prepare_params(weight, bias):
    """One-time parameter prep (do NOT call per forward pass).

    weight: (H_out, H_in) f32 in PyTorch nn.Linear layout.
    Returns (weight.T as bf16 of shape (H_in, H_out), bias as (1, H_out) f32).
    """
    w_t = jnp.asarray(weight).T.astype(jnp.bfloat16)
    b2d = jnp.asarray(bias).reshape(1, -1).astype(jnp.float32)
    return w_t, b2d


def multi_layer_block_prepared(x, w_t, b2d, *, tm=None, tn=None, tk=None):
    """ReLU(x @ W^T + b) with pre-prepared params (w_t = W.T in bf16)."""
    B, H_in = x.shape
    H_in2, H_out = w_t.shape
    assert H_in2 == H_in
    assert b2d.shape == (1, H_out)

    vmem_cap = _vmem_capacity_bytes()
    a_tm, a_tn, a_tk = _choose_tiles(B, H_in, H_out, vmem_cap)
    tm = a_tm if tm is None else tm
    tn = a_tn if tn is None else tn
    tk = a_tk if tk is None else tk

    assert tm == B or (tm % 16 == 0 and B % tm == 0), f"bad tm={tm} for B={B}"
    assert tn == H_out or (tn % 128 == 0 and H_out % tn == 0), f"bad tn={tn}"
    assert tk == H_in or (tk % 128 == 0 and H_in % tk == 0), f"bad tk={tk}"

    # x cast policy: only pre-cast in the wrapper when x is re-streamed > 2x.
    restream_x = H_out // tn
    if x.dtype != jnp.bfloat16 and restream_x > 2:
        x_in = x.astype(jnp.bfloat16)
    else:
        x_in = x                               # streamed as-is, cast in-kernel

    grid = (B // tm, H_out // tn, H_in // tk)

    # --- VMEM budget (double-buffered in/out blocks) -------------------------
    x_item = jnp.dtype(x_in.dtype).itemsize
    est_vmem = (
        2 * (tm * tk * x_item)    # x tiles
        + 2 * (tk * tn * 2)       # bf16 weight tiles
        + 2 * (tn * 4)            # bias tiles
        + 2 * (tm * tn * 4)       # f32 output/accumulator block
    )
    vmem_limit = int(min(max(2 * est_vmem, 32 * 1024 * 1024),
                         int(vmem_cap * 0.9)))

    # --- cost hint with re-streaming factors ---------------------------------
    bytes_accessed = (
        B * H_in * x_item * (H_out // tn)      # x re-read per output-column band
        + H_in * H_out * 2 * (B // tm)         # weight re-read per row band
        + H_out * 4 * (B // tm)                # bias
        + B * H_out * 4                        # output written once
    )
    cost = pl.CostEstimate(
        flops=2 * B * H_in * H_out,
        bytes_accessed=bytes_accessed,
        transcendentals=0,
    )

    return pl.pallas_call(
        _linear_relu_kernel,
        out_shape=jax.ShapeDtypeStruct((B, H_out), jnp.float32),
        grid_spec=pltpu.PrefetchScalarGridSpec(
            num_scalar_prefetch=0,
            grid=grid,
            in_specs=[
                pl.BlockSpec((tm, tk), lambda i, j, k: (i, k)),   # x tile
                pl.BlockSpec((tk, tn), lambda i, j, k: (k, j)),   # weight tile
                pl.BlockSpec((1, tn), lambda i, j, k: (0, j)),    # bias tile
            ],
            out_specs=pl.BlockSpec((tm, tn), lambda i, j, k: (i, j)),
        ),
        compiler_params=pltpu.CompilerParams(
            dimension_semantics=("parallel", "parallel", "arbitrary"),
            vmem_limit_bytes=vmem_limit,
        ),
        cost_estimate=cost,
    )(x_in, w_t, b2d)


def multi_layer_block(x, weight, bias, **kw):
    """Convenience entry point taking raw PyTorch-layout params."""
    w_t, b2d = prepare_params(weight, bias)
    return multi_layer_block_prepared(x, w_t, b2d, **kw)


if __name__ == "__main__":
    hidden = 256   # MultiLayerBlock default hidden_layer_size
    batch = 128

    key = jax.random.PRNGKey(0)
    kx, kw, kb = jax.random.split(key, 3)

    bound = 1.0 / (hidden ** 0.5)
    x = jax.random.normal(kx, (batch, hidden), dtype=jnp.float32)
    weight = jax.random.uniform(kw, (hidden, hidden), dtype=jnp.float32,
                                minval=-bound, maxval=bound)
    bias = jax.random.uniform(kb, (hidden,), dtype=jnp.float32,
                              minval=-bound, maxval=bound)

    # Parameter prep happens once, outside the per-call hot path.
    w_t, b2d = prepare_params(weight, bias)

    out = multi_layer_block_prepared(x, w_t, b2d)
    out = jax.block_until_ready(out)

    # Reference check in plain JAX (f32). bf16 MXU inputs -> looser tolerance.
    ref = jnp.maximum(x @ weight.T + bias, 0.0)
    assert out.shape == (batch, hidden)
    assert jnp.allclose(out, ref, atol=2e-2, rtol=2e-2), (
        float(jnp.max(jnp.abs(out - ref)))
    )

    print("KERNEL_OK")
</pallas_src>

<mosaic_0001>
module attributes {stable_mosaic.version = 11 : i64} {
  func.func @_linear_relu_kernel(%arg0: i32, %arg1: i32, %arg2: i32, %arg3: memref<128x256xf32, #tpu.memory_space<vmem>>, %arg4: memref<256x128xbf16, #tpu.memory_space<vmem>>, %arg5: memref<1x128xf32, #tpu.memory_space<vmem>>, %arg6: memref<128x128xf32, #tpu.memory_space<vmem>>) attributes {dimension_semantics = [#tpu.dimension_semantics<parallel>, #tpu.dimension_semantics<parallel>, #tpu.dimension_semantics<arbitrary>], iteration_bounds = array<i64: 1, 2, 1>, scalar_prefetch = 0 : i64, scratch_operands = 0 : i64, tpu.core_type = #tpu.core_type<tc>, window_params = [{transform_indices = @transform_0, window_bounds = array<i64: 128, 256>}, {transform_indices = @transform_1, window_bounds = array<i64: 256, 128>}, {transform_indices = @transform_2, window_bounds = array<i64: 1, 128>}, {transform_indices = @transform_3, window_bounds = array<i64: 128, 128>}]} {
    %c0_i32 = arith.constant 0 : i32
    %0 = arith.cmpi eq, %arg2, %c0_i32 : i32
    %1 = arith.extui %0 : i1 to i32
    %c0_i32_0 = arith.constant 0 : i32
    %2 = arith.cmpi ne, %1, %c0_i32_0 : i32
    scf.if %2 {
      %cst_10 = arith.constant 0.000000e+00 : f32
      %13 = vector.broadcast %cst_10 : f32 to vector<128x128xf32>
      %c0_11 = arith.constant 0 : index
      %c0_12 = arith.constant 0 : index
      %14 = vector.load %arg6[%c0_11, %c0_12] : memref<128x128xf32, #tpu.memory_space<vmem>>, vector<128x128xf32>
      tpu.vector_store %arg6[%c0_11, %c0_12], %13 {strides = array<i32>} : memref<128x128xf32, #tpu.memory_space<vmem>>, vector<128x128xf32>,
    } else {
    }
    %c0 = arith.constant 0 : index
    %c0_1 = arith.constant 0 : index
    %3 = vector.load %arg3[%c0, %c0_1] : memref<128x256xf32, #tpu.memory_space<vmem>>, vector<128x256xf32>
    %4 = arith.truncf %3 : vector<128x256xf32> to vector<128x256xbf16>
    %c0_2 = arith.constant 0 : index
    %c0_3 = arith.constant 0 : index
    %5 = vector.load %arg6[%c0_2, %c0_3] : memref<128x128xf32, #tpu.memory_space<vmem>>, vector<128x128xf32>
    %c0_4 = arith.constant 0 : index
    %c0_5 = arith.constant 0 : index
    %6 = vector.load %arg4[%c0_4, %c0_5] : memref<256x128xbf16, #tpu.memory_space<vmem>>, vector<256x128xbf16>
    %cst = arith.constant dense<0.000000e+00> : vector<128x128xf32>
    %7 = tpu.matmul %4, %6, %cst {dimension_numbers = #tpu.dot_dimension_numbers<[1], [0], [0], [1], [0, 0, 1, 1], [], []>} : vector<128x256xbf16>, vector<256x128xbf16>, vector<128x128xf32> -> vector<128x128xf32>
    %8 = arith.addf %5, %7 : vector<128x128xf32>
    %c0_6 = arith.constant 0 : index
    %c0_7 = arith.constant 0 : index
    %9 = vector.load %arg6[%c0_6, %c0_7] : memref<128x128xf32, #tpu.memory_space<vmem>>, vector<128x128xf32>
    tpu.vector_store %arg6[%c0_6, %c0_7], %8 {strides = array<i32>} : memref<128x128xf32, #tpu.memory_space<vmem>>, vector<128x128xf32>,
    %c0_i32_8 = arith.constant 0 : i32
    %10 = arith.cmpi eq, %arg2, %c0_i32_8 : i32
    %11 = arith.extui %10 : i1 to i32
    %c0_i32_9 = arith.constant 0 : i32
    %12 = arith.cmpi ne, %11, %c0_i32_9 : i32
    scf.if %12 {
      %c0_10 = arith.constant 0 : index
      %c0_11 = arith.constant 0 : index
      %13 = vector.load %arg6[%c0_10, %c0_11] : memref<128x128xf32, #tpu.memory_space<vmem>>, vector<128x128xf32>
      %c0_12 = arith.constant 0 : index
      %c0_13 = arith.constant 0 : index
      %14 = vector.load %arg5[%c0_12, %c0_13] : memref<1x128xf32, #tpu.memory_space<vmem>>, vector<1x128xf32>
      %15 = vector.broadcast %14 : vector<1x128xf32> to vector<128x128xf32>
      %16 = arith.addf %13, %15 : vector<128x128xf32>
      %cst_14 = arith.constant 0.000000e+00 : f32
      %17 = vector.broadcast %cst_14 : f32 to vector<128x128xf32>
      %18 = arith.maximumf %16, %17 : vector<128x128xf32>
      %c0_15 = arith.constant 0 : index
      %c0_16 = arith.constant 0 : index
      %19 = vector.load %arg6[%c0_15, %c0_16] : memref<128x128xf32, #tpu.memory_space<vmem>>, vector<128x128xf32>
      tpu.vector_store %arg6[%c0_15, %c0_16], %18 {strides = array<i32>} : memref<128x128xf32, #tpu.memory_space<vmem>>, vector<128x128xf32>,
    } else {
    }
    return
  }
  func.func @transform_0(%arg0: i32, %arg1: i32, %arg2: i32) -> (i32, i32) {
    %c0_i32 = arith.constant 0 : i32
    return %arg0, %arg2 : i32, i32
  }
  func.func @transform_1(%arg0: i32, %arg1: i32, %arg2: i32) -> (i32, i32) {
    %c0_i32 = arith.constant 0 : i32
    return %arg2, %arg1 : i32, i32
  }
  func.func @transform_2(%arg0: i32, %arg1: i32, %arg2: i32) -> (i32, i32) {
    %c0_i32 = arith.constant 0 : i32
    %c0_i32_0 = arith.constant 0 : i32
    return %c0_i32, %arg1 : i32, i32
  }
  func.func @transform_3(%arg0: i32, %arg1: i32, %arg2: i32) -> (i32, i32) {
    %c0_i32 = arith.constant 0 : i32
    return %arg0, %arg1 : i32, i32
  }
}

</mosaic_0001>

<llo_original>
// kernel: tpu_custom_call.1
$region0: #{tpu_custom_call.1}
  #allocation0 [shape = 'u32[]', space=smem, size = 0x4, offset = 0x4, fixed_abs, tag = 'smem constant byte address 0x4 - core index']
  #allocation1 [shape = 'u32[144,128]{1,0:T(1,128)}', space=vmem, size = 0x12000, scoped, tag = 'internal scratch']
  %s0 = inlined_call_operand.hbm [shape: f32[128,256], index: 0, kind: input, shape index: {}]
  %s1 = inlined_call_operand.hbm [shape: bf16[256,256], index: 1, kind: input, shape index: {}]
  %s2 = inlined_call_operand.vmem [shape: f32[1,256], index: 2, kind: input, shape index: {}]
  %s3 = inlined_call_operand.hbm [shape: f32[128,256], index: 3, kind: output, shape index: {}]
  %s4 = sld [smem:[#allocation0]]
  $region61: #{tpu_custom_call.1} parent=0
    _
  %s6 = ssub.s32 1, %s4
  %s7 = scalar_select 0, %s6, %s4
  $region1: #{tpu_custom_call.1} parent=0
    #allocation2 [shape = 'u8[131072]{0}', space=vmem, size = 0x20000, scoped, tag = 'input window, operand 0, single buffered']
    #allocation3 [shape = 's32[2]{0}', space=sflag, size = 0x8, scoped, tag = 'scoped memory for tpu_custom_call.1']
    #allocation4 [shape = 's32[2]{0}', space=sflag, size = 0x8, scoped, tag = 'scoped memory for tpu_custom_call.1']
    #allocation5 [shape = 'u8[131072]{0}', space=vmem, size = 0x20000, scoped, tag = 'input window, operand 1']
    #allocation6 [shape = 's32[2]{0}', space=sflag, size = 0x8, scoped, tag = 'scoped memory for tpu_custom_call.1']
    #allocation7 [shape = 'u8[131072]{0}', space=vmem, size = 0x20000, scoped, tag = 'output window, operand 0']
    %8 = vsyncpa [#allocation3], 0
    %9 = vsyncpa [#allocation6], 0
    %s10 = scalar_lea.sflag [#allocation6], 1
    %11 = vsyncpa %s10, 0
    %12 = vsyncpa [#allocation4], 0
    %s13 = scalar_lea.sflag [#allocation4], 1
    %14 = vsyncpa %s13, 0
    loop: start=0, step=1, limit=4
    $region2: #{tpu_custom_call.1} parent=1 // loop_pre_header
      _
    $region3: #{tpu_custom_call.1} parent=1 // loop_header
      %s16 = sphi 0, %s20
      %p17 = scmp.ge.s32.totalorder %s16, 4
      %s23 = sphi 0, %s42
      %s24 = sphi 0, %s38
      %s25 = sphi 0, %s34
      %s26 = sphi 0, %s23
      %s27 = sphi 0, %s24
      %s28 = sphi 0, %s25
      %s29 = sphi 0, %s26
      %s30 = sphi 0, %s27
      %s31 = sphi 0, %s28
      %s47 = sphi 0, %s49
      %s50 = sphi 0, %s47
      %s51 = sphi 0, %s50
      %s67 = sphi 0, %s51
      %s75 = sphi 0, %s77
      %s78 = sphi 0, %s75
      %s79 = sphi 0, %s78
      %s95 = sphi 0, %s79
      %s101 = sphi 0, %s103
      %s104 = sphi 0, %s101
      %s105 = sphi 0, %s104
      %s121 = sphi 0, %s105
      %s129 = sphi 0, %s131
      %s132 = sphi 0, %s129
      %s133 = sphi 0, %s132
      %s149 = sphi 0, %s133
    $region4: #{tpu_custom_call.1} parent=1 // loop_header_branch
      %19 = sbr.rel (%p17) target = $region8
    $region5: #{tpu_custom_call.1} parent=1 // loop_body
      %s21 = ssub.s32 %s16, 1
      %s22 = ssub.s32 %s16, 2
      %s32 = sadd.s32 1, %s25
      %p33 = scmp.ge.s32.totalorder %s32, 1
      %s34 = scalar_select %p33, 0, %s32
      %s35 = sadd.s32 1, %s24
      %s36 = scalar_select %p33, %s35, %s24
      %p37 = scmp.ge.s32.totalorder %s36, 2
      %s38 = scalar_select %p37, 0, %s36
      %s39 = sadd.s32 1, %s23
      %s40 = scalar_select %p37, %s39, %s23
      %p41 = scmp.ge.s32.totalorder %s40, 1
      %s42 = scalar_select %p41, 0, %s40
      %s43 = ssub.s32 %s23, %s42
      %s44 = ssub.s32 %s25, %s34
      %s45 = sor.u32 %s43, %s44
      %p46 = scmp.eq.s32.totalorder %s45, 0
      %s48 = sadd.s32 %s47, 1
      %s49 = scalar_select %p46, %s47, %s48
      %p52 = pneg %p46
      %p53 = scmp.eq.s32.totalorder %s16, 1
      %p54 = por %p52, %p53
      %p55 = scmp.ne.s32.totalorder %s47, %s50
      %p56 = scmp.eq.s32.totalorder %s16, 0
      %p57 = por %p55, %p56
      %p58 = scmp.ne.s32.totalorder %s47, %s50
      %p59 = scmp.eq.s32.totalorder %s21, 1
      %p60 = por %p58, %p59
      %p61 = scmp.ne.s32.totalorder %s50, %s51
      %p62 = scmp.eq.s32.totalorder %s21, 0
      %p63 = por %p61, %p62
      %p64 = scmp.ne.s32.totalorder %s50, %s51
      %p65 = scmp.eq.s32.totalorder %s22, 1
      %p66 = por %p64, %p65
      %p68 = scmp.ne.s32.totalorder %s51, %s67
      %p69 = scmp.eq.s32.totalorder %s22, 0
      %p70 = por %p68, %p69
      %s71 = ssub.s32 %s25, %s34
      %s72 = ssub.s32 %s24, %s38
      %s73 = sor.u32 %s71, %s72
      %p74 = scmp.eq.s32.totalorder %s73, 0
      %s76 = sadd.s32 %s75, 1
      %s77 = scalar_select %p74, %s75, %s76
      %p80 = pneg %p74
      %p81 = scmp.eq.s32.totalorder %s16, 1
      %p82 = por %p80, %p81
      %p83 = scmp.ne.s32.totalorder %s75, %s78
      %p84 = scmp.eq.s32.totalorder %s16, 0
      %p85 = por %p83, %p84
      %p86 = scmp.ne.s32.totalorder %s75, %s78
      %p87 = scmp.eq.s32.totalorder %s21, 1
      %p88 = por %p86, %p87
      %p89 = scmp.ne.s32.totalorder %s78, %s79
      %p90 = scmp.eq.s32.totalorder %s21, 0
      %p91 = por %p89, %p90
      %p92 = scmp.ne.s32.totalorder %s78, %s79
      %p93 = scmp.eq.s32.totalorder %s22, 1
      %p94 = por %p92, %p93
      %p96 = scmp.ne.s32.totalorder %s79, %s95
      %p97 = scmp.eq.s32.totalorder %s22, 0
      %p98 = por %p96, %p97
      %s99 = ssub.s32 %s24, %s38
      %p100 = scmp.eq.s32.totalorder %s99, 0
      %s102 = sadd.s32 %s101, 1
      %s103 = scalar_select %p100, %s101, %s102
      %p106 = pneg %p100
      %p107 = scmp.eq.s32.totalorder %s16, 1
      %p108 = por %p106, %p107
      %p109 = scmp.ne.s32.totalorder %s101, %s104
      %p110 = scmp.eq.s32.totalorder %s16, 0
      %p111 = por %p109, %p110
      %p112 = scmp.ne.s32.totalorder %s101, %s104
      %p113 = scmp.eq.s32.totalorder %s21, 1
      %p114 = por %p112, %p113
      %p115 = scmp.ne.s32.totalorder %s104, %s105
      %p116 = scmp.eq.s32.totalorder %s21, 0
      %p117 = por %p115, %p116
      %p118 = scmp.ne.s32.totalorder %s104, %s105
      %p119 = scmp.eq.s32.totalorder %s22, 1
      %p120 = por %p118, %p119
      %p122 = scmp.ne.s32.totalorder %s105, %s121
      %p123 = scmp.eq.s32.totalorder %s22, 0
      %p124 = por %p122, %p123
      %s125 = ssub.s32 %s23, %s42
      %s126 = ssub.s32 %s24, %s38
      %s127 = sor.u32 %s125, %s126
      %p128 = scmp.eq.s32.totalorder %s127, 0
      %s130 = sadd.s32 %s129, 1
      %s131 = scalar_select %p128, %s129, %s130
      %p134 = pneg %p128
      %p135 = scmp.eq.s32.totalorder %s16, 1
      %p136 = por %p134, %p135
      %p137 = scmp.ne.s32.totalorder %s129, %s132
      %p138 = scmp.eq.s32.totalorder %s16, 0
      %p139 = por %p137, %p138
      %p140 = scmp.ne.s32.totalorder %s129, %s132
      %p141 = scmp.eq.s32.totalorder %s21, 1
      %p142 = por %p140, %p141
      %p143 = scmp.ne.s32.totalorder %s132, %s133
      %p144 = scmp.eq.s32.totalorder %s21, 0
      %p145 = por %p143, %p144
      %p146 = scmp.ne.s32.totalorder %s132, %s133
      %p147 = scmp.eq.s32.totalorder %s22, 1
      %p148 = por %p146, %p147
      %p150 = scmp.ne.s32.totalorder %s133, %s149
      %p151 = scmp.eq.s32.totalorder %s22, 0
      %p152 = por %p150, %p151
      %p153 = scmp.le.s32.totalorder 1, %s16
      %p154 = scmp.lt.s32.totalorder %s16, 3
      %p155 = pnand %p153, %p154
      %p156 = pneg %p155
      // Predicated region
      $region9: #{tpu_custom_call.1} parent=5 // pred_check
        _
      $region10: #{tpu_custom_call.1} parent=5 // pred_check_branch
        %158 = sbr.rel (%p155) target = $region12
      $region11: #{tpu_custom_call.1} parent=5 // pred_region
        %s159 = ssub.s32 %s16, 1
        // Predicated region
        $region13: #{tpu_custom_call.1} parent=11 // pred_check
          %p160 = pneg %p63
        $region14: #{tpu_custom_call.1} parent=11 // pred_check_branch
          %162 = sbr.rel (%p160) target = $region16
        $region15: #{tpu_custom_call.1} parent=11 // pred_region
          %s163 = smul.u32 16, %s26
          %s164 = smul.u32 2, %s28
          %s166 = ssub.s32 4096, 4096
          %167 = vsyncadd [#allocation3], %s166
          %s168 = smul.addr %s163, 2
          %s169 = sadd.s32 %s164, %s168
          %s170 = smul.addr %s169, 128
          %s171 = scalar_lea.hbm %s0, %s170
          %s172 = sshll.u32 [#allocation2], 4
          %s173 = int_to_ptr.vmem [resolvable:$true] %s172
          %178 = dma.hbm_to_vmem [thread:$0]  %s171, 4096, %s173, [#allocation3], 256, 256, 16
        $region16: #{tpu_custom_call.1} parent=11 // pred_fallthru
          _
      $region12: #{tpu_custom_call.1} parent=5 // pred_fallthru
        _
      %p179 = scmp.lt.s32.totalorder %s16, 2
      // Predicated region
      $region17: #{tpu_custom_call.1} parent=5 // pred_check
        %p180 = pneg %p179
      $region18: #{tpu_custom_call.1} parent=5 // pred_check_branch
        %182 = sbr.rel (%p180) target = $region20
      $region19: #{tpu_custom_call.1} parent=5 // pred_region
        // Predicated region
        $region21: #{tpu_custom_call.1} parent=19 // pred_check
          %p183 = pneg %p85
        $region22: #{tpu_custom_call.1} parent=19 // pred_check_branch
          %185 = sbr.rel (%p183) target = $region24
        $region23: #{tpu_custom_call.1} parent=19 // pred_region
          %s186 = sand.u32 %s75, 1
          %s187 = scalar_lea.sflag [#allocation6], %s186
          %s188 = sand.u32 %s75, 1
          %s189 = smul.addr %s188, 128
          %s190 = scalar_lea.vmem [#allocation5], %s189
          %s191 = smul.u32 32, %s25
          %s193 = ssub.s32 2048, 2048
          %194 = vsyncadd %s187, %s193
          %s195 = smul.addr %s191, 2
          %s196 = sadd.s32 %s24, %s195
          %s197 = smul.addr %s196, 64
          %s198 = scalar_lea.hbm %s1, %s197
          %s199 = sshll.u32 %s190, 4
          %s200 = int_to_ptr.vmem [resolvable:$true] %s199
          %205 = dma.hbm_to_vmem [thread:$0]  %s198, 2048, %s200, %s187, 128, 64, 4
        $region24: #{tpu_custom_call.1} parent=19 // pred_fallthru
          _
        // Predicated region
        $region25: #{tpu_custom_call.1} parent=19 // pred_check
          %p206 = pneg %p111
        $region26: #{tpu_custom_call.1} parent=19 // pred_check_branch
          %208 = sbr.rel (%p206) target = $region28
        $region27: #{tpu_custom_call.1} parent=19 // pred_region
          %p209 = scmp.lt.s32.totalorder %s24, 1
          %s210 = scalar_select %p209, %s24, 1
          %s211 = scalar_lea.vmem %s2, %s210
        $region28: #{tpu_custom_call.1} parent=19 // pred_fallthru
          _
      $region20: #{tpu_custom_call.1} parent=5 // pred_fallthru
        _
      %p212 = scmp.le.s32.totalorder 1, %s16
      %p213 = scmp.lt.s32.totalorder %s16, 3
      %p214 = pnand %p212, %p213
      %p215 = pneg %p214
      // Predicated region
      $region29: #{tpu_custom_call.1} parent=5 // pred_check
        _
      $region30: #{tpu_custom_call.1} parent=5 // pred_check_branch
        %217 = sbr.rel (%p214) target = $region32
      $region31: #{tpu_custom_call.1} parent=5 // pred_region
        %s218 = ssub.s32 %s16, 1
        // Predicated region
        $region33: #{tpu_custom_call.1} parent=31 // pred_check
          %p219 = pneg %p63
        $region34: #{tpu_custom_call.1} parent=31 // pred_check_branch
          %221 = sbr.rel (%p219) target = $region36
        $region35: #{tpu_custom_call.1} parent=31 // pred_region
          %222 = dma.done [#allocation3], 4096
        $region36: #{tpu_custom_call.1} parent=31 // pred_fallthru
          _
        %s223 = sand.u32 %s78, 1
        %s224 = scalar_lea.sflag [#allocation6], %s223
        %s225 = sand.u32 %s78, 1
        %s226 = smul.addr %s225, 128
        %s227 = scalar_lea.vmem [#allocation5], %s226
        // Predicated region
        $region37: #{tpu_custom_call.1} parent=31 // pred_check
          %p228 = pneg %p91
        $region38: #{tpu_custom_call.1} parent=31 // pred_check_branch
          %230 = sbr.rel (%p228) target = $region40
        $region39: #{tpu_custom_call.1} parent=31 // pred_region
          %231 = dma.done %s224, 2048
        $region40: #{tpu_custom_call.1} parent=31 // pred_fallthru
          _
        %p232 = pneg %p63
        %p233 = pneg %p60
        %s234 = sand.u32 %s78, 1
        %s235 = scalar_lea.sflag [#allocation6], %s234
        %s236 = sand.u32 %s78, 1
        %s237 = smul.addr %s236, 128
        %s238 = scalar_lea.vmem [#allocation5], %s237
        %p239 = pneg %p91
        %p240 = pneg %p88
        %p241 = scmp.lt.s32.totalorder %s27, 1
        %s242 = scalar_select %p241, %s27, 1
        %s243 = scalar_lea.vmem %s2, %s242
        %p244 = pneg %p117
        %p245 = pneg %p114
        %p246 = pneg %p145
        %p247 = pneg %p142
        %s248 = sand.u32 %s132, 1
        %s249 = scalar_lea.sflag [#allocation4], %s248
        %s250 = sand.u32 %s132, 1
        %s251 = smul.addr %s250, 128
        %s252 = scalar_lea.vmem [#allocation7], %s251
        %s253 = smul.u32 16, %s26
        %s254 = smul.u32 2, %s28
        %s255 = smul.u32 32, %s28
        %p256 = scmp.lt.s32.totalorder %s27, 1
        %s257 = scalar_select %p256, %s27, 1
        %s258 = scalar_lea.vmem %s2, %s257
        %s259 = smul.u32 16, %s26
        %p261 = scmp.eq.s32.totalorder %s28, 0
        // Predicated region
        $region41: #{tpu_custom_call.1} parent=31 // pred_check
          %p262 = pneg %p261
        $region42: #{tpu_custom_call.1} parent=31 // pred_check_branch
          %264 = sbr.rel (%p262) target = $region44
        $region43: #{tpu_custom_call.1} parent=31 // pred_region
          %265 = vst [vmem:[%s252] sm:$0xff] 0.0
          %266 = vst [vmem:[%s252 + $0x8] sm:$0xff] 0.0
          %267 = vst [vmem:[%s252 + $0x10] sm:$0xff] 0.0
          %268 = vst [vmem:[%s252 + $0x18] sm:$0xff] 0.0
          %269 = vst [vmem:[%s252 + $0x20] sm:$0xff] 0.0
          %270 = vst [vmem:[%s252 + $0x28] sm:$0xff] 0.0
          %271 = vst [vmem:[%s252 + $0x30] sm:$0xff] 0.0
          %272 = vst [vmem:[%s252 + $0x38] sm:$0xff] 0.0
          %273 = vst [vmem:[%s252 + $0x40] sm:$0xff] 0.0
          %274 = vst [vmem:[%s252 + $0x48] sm:$0xff] 0.0
          %275 = vst [vmem:[%s252 + $0x50] sm:$0xff] 0.0
          %276 = vst [vmem:[%s252 + $0x58] sm:$0xff] 0.0
          %277 = vst [vmem:[%s252 + $0x60] sm:$0xff] 0.0
          %278 = vst [vmem:[%s252 + $0x68] sm:$0xff] 0.0
          %279 = vst [vmem:[%s252 + $0x70] sm:$0xff] 0.0
          %280 = vst [vmem:[%s252 + $0x78] sm:$0xff] 0.0
        $region44: #{tpu_custom_call.1} parent=31 // pred_fallthru
          _
        %v281 = vld [vmem:[#allocation2] sm:$0xff]
        %v282 = vld [vmem:[#allocation2 + $0x8] sm:$0xff]
        %v283 = vld [vmem:[#allocation2 + $0x10] sm:$0xff]
        %v284 = vld [vmem:[#allocation2 + $0x18] sm:$0xff]
        %v285 = vld [vmem:[#allocation2 + $0x20] sm:$0xff]
        %v286 = vld [vmem:[#allocation2 + $0x28] sm:$0xff]
        %v287 = vld [vmem:[#allocation2 + $0x30] sm:$0xff]
        %v288 = vld [vmem:[#allocation2 + $0x38] sm:$0xff]
        %v289 = vld [vmem:[#allocation2 + $0x40] sm:$0xff]
        %v290 = vld [vmem:[#allocation2 + $0x48] sm:$0xff]
        %v291 = vld [vmem:[#allocation2 + $0x50] sm:$0xff]
        %v292 = vld [vmem:[#allocation2 + $0x58] sm:$0xff]
        %v293 = vld [vmem:[#allocation2 + $0x60] sm:$0xff]
        %v294 = vld [vmem:[#allocation2 + $0x68] sm:$0xff]
        %v295 = vld [vmem:[#allocation2 + $0x70] sm:$0xff]
        %v296 = vld [vmem:[#allocation2 + $0x78] sm:$0xff]
        %v297 = vld [vmem:[#allocation2 + $0x80] sm:$0xff]
        %v298 = vld [vmem:[#allocation2 + $0x88] sm:$0xff]
        %v299 = vld [vmem:[#allocation2 + $0x90] sm:$0xff]
        %v300 = vld [vmem:[#allocation2 + $0x98] sm:$0xff]
        %v301 = vld [vmem:[#allocation2 + $0xa0] sm:$0xff]
        %v302 = vld [vmem:[#allocation2 + $0xa8] sm:$0xff]
        %v303 = vld [vmem:[#allocation2 + $0xb0] sm:$0xff]
        %v304 = vld [vmem:[#allocation2 + $0xb8] sm:$0xff]
        %v305 = vld [vmem:[#allocation2 + $0xc0] sm:$0xff]
        %v306 = vld [vmem:[#allocation2 + $0xc8] sm:$0xff]
        %v307 = vld [vmem:[#allocation2 + $0xd0] sm:$0xff]
        %v308 = vld [vmem:[#allocation2 + $0xd8] sm:$0xff]
        %v309 = vld [vmem:[#allocation2 + $0xe0] sm:$0xff]
        %v310 = vld [vmem:[#allocation2 + $0xe8] sm:$0xff]
        %v311 = vld [vmem:[#allocation2 + $0xf0] sm:$0xff]
        %v312 = vld [vmem:[#allocation2 + $0xf8] sm:$0xff]
        %v313 = vpack.c.bf16 %v283, %v281
        %v314 = vpack.c.bf16 %v284, %v282
        %v315 = vpack.c.bf16 %v287, %v285
        %v316 = vpack.c.bf16 %v288, %v286
        %v317 = vpack.c.bf16 %v291, %v289
        %v318 = vpack.c.bf16 %v292, %v290
        %v319 = vpack.c.bf16 %v295, %v293
        %v320 = vpack.c.bf16 %v296, %v294
        %v321 = vpack.c.bf16 %v299, %v297
        %v322 = vpack.c.bf16 %v300, %v298
        %v323 = vpack.c.bf16 %v303, %v301
        %v324 = vpack.c.bf16 %v304, %v302
        %v325 = vpack.c.bf16 %v307, %v305
        %v326 = vpack.c.bf16 %v308, %v306
        %v327 = vpack.c.bf16 %v311, %v309
        %v328 = vpack.c.bf16 %v312, %v310
        %v329 = vld [vmem:[%s252] sm:$0xff]
        %v330 = vld [vmem:[%s252 + $0x8] sm:$0xff]
        %v331 = vld [vmem:[%s252 + $0x10] sm:$0xff]
        %v332 = vld [vmem:[%s252 + $0x18] sm:$0xff]
        %v333 = vld [vmem:[%s252 + $0x20] sm:$0xff]
        %v334 = vld [vmem:[%s252 + $0x28] sm:$0xff]
        %v335 = vld [vmem:[%s252 + $0x30] sm:$0xff]
        %v336 = vld [vmem:[%s252 + $0x38] sm:$0xff]
        %v337 = vld [vmem:[%s252 + $0x40] sm:$0xff]
        %v338 = vld [vmem:[%s252 + $0x48] sm:$0xff]
        %v339 = vld [vmem:[%s252 + $0x50] sm:$0xff]
        %v340 = vld [vmem:[%s252 + $0x58] sm:$0xff]
        %v341 = vld [vmem:[%s252 + $0x60] sm:$0xff]
        %v342 = vld [vmem:[%s252 + $0x68] sm:$0xff]
        %v343 = vld [vmem:[%s252 + $0x70] sm:$0xff]
        %v344 = vld [vmem:[%s252 + $0x78] sm:$0xff]
        %v345 = vld [vmem:[%s227] sm:$0xf]
        %v346 = vld [vmem:[%s227 + $0x4] sm:$0xf]
        %v347 = vld [vmem:[%s227 + $0x8] sm:$0xf]
        %v348 = vld [vmem:[%s227 + $0xc] sm:$0xf]
        %v349 = vld [vmem:[%s227 + $0x10] sm:$0xf]
        %v350 = vld [vmem:[%s227 + $0x14] sm:$0xf]
        %v351 = vld [vmem:[%s227 + $0x18] sm:$0xf]
        %v352 = vld [vmem:[%s227 + $0x1c] sm:$0xf]
        %v353 = vld [vmem:[%s227 + $0x20] sm:$0xf]
        %v354 = vld [vmem:[%s227 + $0x24] sm:$0xf]
        %v355 = vld [vmem:[%s227 + $0x28] sm:$0xf]
        %v356 = vld [vmem:[%s227 + $0x2c] sm:$0xf]
        %v357 = vld [vmem:[%s227 + $0x30] sm:$0xf]
        %v358 = vld [vmem:[%s227 + $0x34] sm:$0xf]
        %v359 = vld [vmem:[%s227 + $0x38] sm:$0xf]
        %v360 = vld [vmem:[%s227 + $0x3c] sm:$0xf]
        %v361 = vld [vmem:[%s227 + $0x40] sm:$0xf]
        %v362 = vld [vmem:[%s227 + $0x44] sm:$0xf]
        %v363 = vld [vmem:[%s227 + $0x48] sm:$0xf]
        %v364 = vld [vmem:[%s227 + $0x4c] sm:$0xf]
        %v365 = vld [vmem:[%s227 + $0x50] sm:$0xf]
        %v366 = vld [vmem:[%s227 + $0x54] sm:$0xf]
        %v367 = vld [vmem:[%s227 + $0x58] sm:$0xf]
        %v368 = vld [vmem:[%s227 + $0x5c] sm:$0xf]
        %v369 = vld [vmem:[%s227 + $0x60] sm:$0xf]
        %v370 = vld [vmem:[%s227 + $0x64] sm:$0xf]
        %v371 = vld [vmem:[%s227 + $0x68] sm:$0xf]
        %v372 = vld [vmem:[%s227 + $0x6c] sm:$0xf]
        %v373 = vld [vmem:[%s227 + $0x70] sm:$0xf]
        %v374 = vld [vmem:[%s227 + $0x74] sm:$0xf]
        %v375 = vld [vmem:[%s227 + $0x78] sm:$0xf]
        %v376 = vld [vmem:[%s227 + $0x7c] sm:$0xf]
        %v409 = vunpack.c.l.b16 %v345
        %v410 = vunpack.c.l.b16 %v346
        %v411 = vunpack.c.l.b16 %v347
        %v412 = vunpack.c.l.b16 %v348
        %v413 = vunpack.c.l.b16 %v349
        %v414 = vunpack.c.l.b16 %v350
        %v415 = vunpack.c.l.b16 %v351
        %v416 = vunpack.c.l.b16 %v352
        %v417 = vunpack.c.l.b16 %v353
        %v418 = vunpack.c.l.b16 %v354
        %v419 = vunpack.c.l.b16 %v355
        %v420 = vunpack.c.l.b16 %v356
        %v421 = vunpack.c.l.b16 %v357
        %v422 = vunpack.c.l.b16 %v358
        %v423 = vunpack.c.l.b16 %v359
        %v424 = vunpack.c.l.b16 %v360
        %v425 = vunpack.c.l.b16 %v361
        %v426 = vunpack.c.l.b16 %v362
        %v427 = vunpack.c.l.b16 %v363
        %v428 = vunpack.c.l.b16 %v364
        %v429 = vunpack.c.l.b16 %v365
        %v430 = vunpack.c.l.b16 %v366
        %v431 = vunpack.c.l.b16 %v367
        %v432 = vunpack.c.l.b16 %v368
        %v433 = vunpack.c.l.b16 %v369
        %v434 = vunpack.c.l.b16 %v370
        %v435 = vunpack.c.l.b16 %v371
        %v436 = vunpack.c.l.b16 %v372
        %v437 = vunpack.c.l.b16 %v373
        %v438 = vunpack.c.l.b16 %v374
        %v439 = vunpack.c.l.b16 %v375
        %v440 = vunpack.c.l.b16 %v376
        %v441 = vpack.c.b16 %v410, %v409
        %v442 = vpack.c.b16 %v412, %v411
        %v443 = vpack.c.b16 %v414, %v413
        %v444 = vpack.c.b16 %v416, %v415
        %v445 = vpack.c.b16 %v418, %v417
        %v446 = vpack.c.b16 %v420, %v419
        %v447 = vpack.c.b16 %v422, %v421
        %v448 = vpack.c.b16 %v424, %v423
        %v449 = vpack.c.b16 %v426, %v425
        %v450 = vpack.c.b16 %v428, %v427
        %v451 = vpack.c.b16 %v430, %v429
        %v452 = vpack.c.b16 %v432, %v431
        %v453 = vpack.c.b16 %v434, %v433
        %v454 = vpack.c.b16 %v436, %v435
        %v455 = vpack.c.b16 %v438, %v437
        %v456 = vpack.c.b16 %v440, %v439
        %473 = vmatprep.subr.bf16.mxu0 0
        %474 = vmatpush1.bf16.msra.mxu0 %v441
        %475 = vmatprep.subr.bf16.mxu0 0
        %476 = vmatpush1.bf16.msra.mxu0 %v442
        %477 = vmatprep.subr.bf16.mxu0 0
        %478 = vmatpush1.bf16.msra.mxu0 %v443
        %479 = vmatprep.subr.bf16.mxu0 0
        %480 = vmatpush1.bf16.msra.mxu0 %v444
        %481 = vmatprep.subr.bf16.mxu0 0
        %482 = vmatpush1.bf16.msra.mxu0 %v445
        %483 = vmatprep.subr.bf16.mxu0 0
        %484 = vmatpush1.bf16.msra.mxu0 %v446
        %485 = vmatprep.subr.bf16.mxu0 0
        %486 = vmatpush1.bf16.msra.mxu0 %v447
        %487 = vmatprep.subr.bf16.mxu0 0
        %488 = vmatpush1.bf16.msra.mxu0 %v448
        %489 = vmatprep.subr.bf16.mxu0 0
        %490 = vmatpush1.bf16.msra.mxu0 %v449
        %491 = vmatprep.subr.bf16.mxu0 0
        %492 = vmatpush1.bf16.msra.mxu0 %v450
        %493 = vmatprep.subr.bf16.mxu0 0
        %494 = vmatpush1.bf16.msra.mxu0 %v451
        %495 = vmatprep.subr.bf16.mxu0 0
        %496 = vmatpush1.bf16.msra.mxu0 %v452
        %497 = vmatprep.subr.bf16.mxu0 0
        %498 = vmatpush1.bf16.msra.mxu0 %v453
        %499 = vmatprep.subr.bf16.mxu0 0
        %500 = vmatpush1.bf16.msra.mxu0 %v454
        %501 = vmatprep.subr.bf16.mxu0 0
        %502 = vmatpush1.bf16.msra.mxu0 %v455
        %503 = vmatprep.subr.bf16.mxu0 0
        %504 = vmatpush1.bf16.msra.mxu0 %v456
        %505 = vmatprep.mubr.bf16.mxu0 %v314
        %506 = vmatmul.mubr.bf16.gmra.mrb[0].mxu0 %v313
        %v507 = vpop.f32.mrb[0].mxu0
        %v508 = vadd.f32 0.0, %v507
        %v509 = vpop.f32.mrb[0].mxu0
        %v510 = vpop.f32.mrb[0].mxu0
        %v511 = vadd.f32 0.0, %v510
        %v512 = vpop.f32.mrb[0].mxu0
        %513 = vmatprep.mubr.bf16.mxu0 %v316
        %514 = vmatmul.mubr.bf16.gmra.mrb[0].mxu0 %v315
        %v515 = vpop.f32.mrb[0].mxu0
        %v516 = vadd.f32 0.0, %v515
        %v517 = vpop.f32.mrb[0].mxu0
        %v518 = vpop.f32.mrb[0].mxu0
        %v519 = vadd.f32 0.0, %v518
        %v520 = vpop.f32.mrb[0].mxu0
        %521 = vmatprep.mubr.bf16.mxu0 %v318
        %522 = vmatmul.mubr.bf16.gmra.mrb[0].mxu0 %v317
        %v523 = vpop.f32.mrb[0].mxu0
        %v524 = vadd.f32 0.0, %v523
        %v525 = vpop.f32.mrb[0].mxu0
        %v526 = vpop.f32.mrb[0].mxu0
        %v527 = vadd.f32 0.0, %v526
        %v528 = vpop.f32.mrb[0].mxu0
        %529 = vmatprep.mubr.bf16.mxu0 %v320
        %530 = vmatmul.mubr.bf16.gmra.mrb[0].mxu0 %v319
        %v531 = vpop.f32.mrb[0].mxu0
        %v532 = vadd.f32 0.0, %v531
        %v533 = vpop.f32.mrb[0].mxu0
        %v534 = vpop.f32.mrb[0].mxu0
        %v535 = vadd.f32 0.0, %v534
        %v536 = vpop.f32.mrb[0].mxu0
        %537 = vmatprep.mubr.bf16.mxu0 %v322
        %538 = vmatmul.mubr.bf16.gmra.mrb[0].mxu0 %v321
        %v539 = vpop.f32.mrb[0].mxu0
        %v540 = vadd.f32 0.0, %v539
        %v541 = vpop.f32.mrb[0].mxu0
        %v542 = vpop.f32.mrb[0].mxu0
        %v543 = vadd.f32 0.0, %v542
        %v544 = vpop.f32.mrb[0].mxu0
        %545 = vmatprep.mubr.bf16.mxu0 %v324
        %546 = vmatmul.mubr.bf16.gmra.mrb[0].mxu0 %v323
        %v547 = vpop.f32.mrb[0].mxu0
        %v548 = vadd.f32 0.0, %v547
        %v549 = vpop.f32.mrb[0].mxu0
        %v550 = vpop.f32.mrb[0].mxu0
        %v551 = vadd.f32 0.0, %v550
        %v552 = vpop.f32.mrb[0].mxu0
        %553 = vmatprep.mubr.bf16.mxu0 %v326
        %554 = vmatmul.mubr.bf16.gmra.mrb[0].mxu0 %v325
        %v555 = vpop.f32.mrb[0].mxu0
        %v556 = vadd.f32 0.0, %v555
        %v557 = vpop.f32.mrb[0].mxu0
        %v558 = vpop.f32.mrb[0].mxu0
        %v559 = vadd.f32 0.0, %v558
        %v560 = vpop.f32.mrb[0].mxu0
        %561 = vmatprep.mubr.bf16.mxu0 %v328
        %562 = vmatmul.mubr.bf16.gmra.mrb[0].mxu0 %v327
        %v563 = vpop.f32.mrb[0].mxu0
        %v564 = vadd.f32 0.0, %v563
        %v565 = vpop.f32.mrb[0].mxu0
        %v566 = vpop.f32.mrb[0].mxu0
        %v567 = vadd.f32 0.0, %v566
        %v568 = vpop.f32.mrb[0].mxu0
        %569 = vdwg.mxu0
        %v570 = vadd.f32 %v329, %v508
        %v571 = vadd.f32 %v330, %v511
        %v572 = vadd.f32 %v331, %v516
        %v573 = vadd.f32 %v332, %v519
        %v574 = vadd.f32 %v333, %v524
        %v575 = vadd.f32 %v334, %v527
        %v576 = vadd.f32 %v335, %v532
        %v577 = vadd.f32 %v336, %v535
        %v578 = vadd.f32 %v337, %v540
        %v579 = vadd.f32 %v338, %v543
        %v580 = vadd.f32 %v339, %v548
        %v581 = vadd.f32 %v340, %v551
        %v582 = vadd.f32 %v341, %v556
        %v583 = vadd.f32 %v342, %v559
        %v584 = vadd.f32 %v343, %v564
        %v585 = vadd.f32 %v344, %v567
        %586 = vst [vmem:[%s252] sm:$0xff] %v570
        %587 = vst [vmem:[%s252 + $0x8] sm:$0xff] %v571
        %588 = vst [vmem:[%s252 + $0x10] sm:$0xff] %v572
        %589 = vst [vmem:[%s252 + $0x18] sm:$0xff] %v573
        %590 = vst [vmem:[%s252 + $0x20] sm:$0xff] %v574
        %591 = vst [vmem:[%s252 + $0x28] sm:$0xff] %v575
        %592 = vst [vmem:[%s252 + $0x30] sm:$0xff] %v576
        %593 = vst [vmem:[%s252 + $0x38] sm:$0xff] %v577
        %594 = vst [vmem:[%s252 + $0x40] sm:$0xff] %v578
        %595 = vst [vmem:[%s252 + $0x48] sm:$0xff] %v579
        %596 = vst [vmem:[%s252 + $0x50] sm:$0xff] %v580
        %597 = vst [vmem:[%s252 + $0x58] sm:$0xff] %v581
        %598 = vst [vmem:[%s252 + $0x60] sm:$0xff] %v582
        %599 = vst [vmem:[%s252 + $0x68] sm:$0xff] %v583
        %600 = vst [vmem:[%s252 + $0x70] sm:$0xff] %v584
        %601 = vst [vmem:[%s252 + $0x78] sm:$0xff] %v585
        // Predicated region
        $region45: #{tpu_custom_call.1} parent=31 // pred_check
          %p602 = pneg %p261
        $region46: #{tpu_custom_call.1} parent=31 // pred_check_branch
          %604 = sbr.rel (%p602) target = $region48
        $region47: #{tpu_custom_call.1} parent=31 // pred_region
          %v605 = vld [vmem:[%s252] sm:$0xff]
          %v606 = vld [vmem:[%s252 + $0x8] sm:$0xff]
          %v607 = vld [vmem:[%s252 + $0x10] sm:$0xff]
          %v608 = vld [vmem:[%s252 + $0x18] sm:$0xff]
          %v609 = vld [vmem:[%s252 + $0x20] sm:$0xff]
          %v610 = vld [vmem:[%s252 + $0x28] sm:$0xff]
          %v611 = vld [vmem:[%s252 + $0x30] sm:$0xff]
          %v612 = vld [vmem:[%s252 + $0x38] sm:$0xff]
          %v613 = vld [vmem:[%s252 + $0x40] sm:$0xff]
          %v614 = vld [vmem:[%s252 + $0x48] sm:$0xff]
          %v615 = vld [vmem:[%s252 + $0x50] sm:$0xff]
          %v616 = vld [vmem:[%s252 + $0x58] sm:$0xff]
          %v617 = vld [vmem:[%s252 + $0x60] sm:$0xff]
          %v618 = vld [vmem:[%s252 + $0x68] sm:$0xff]
          %v619 = vld [vmem:[%s252 + $0x70] sm:$0xff]
          %v620 = vld [vmem:[%s252 + $0x78] sm:$0xff]
          %v621 = vld [vmem:[%s258] sm:$0x1]
          %v623 = vlaneseq
          %v624 = vshrl.u32 %v623, 7
          %v625 = vsub.s32 0, %v624
          %v626 = vrot.slane %v621, %v625
          %v628 = vadd.f32 %v605, %v626
          %v629 = vadd.f32 %v606, %v626
          %v630 = vadd.f32 %v607, %v626
          %v631 = vadd.f32 %v608, %v626
          %v632 = vadd.f32 %v609, %v626
          %v633 = vadd.f32 %v610, %v626
          %v634 = vadd.f32 %v611, %v626
          %v635 = vadd.f32 %v612, %v626
          %v636 = vadd.f32 %v613, %v626
          %v637 = vadd.f32 %v614, %v626
          %v638 = vadd.f32 %v615, %v626
          %v639 = vadd.f32 %v616, %v626
          %v640 = vadd.f32 %v617, %v626
          %v641 = vadd.f32 %v618, %v626
          %v642 = vadd.f32 %v619, %v626
          %v643 = vadd.f32 %v620, %v626
          %v644 = vmax.f32 %v628, 0.0
          %v645 = vmax.f32 %v629, 0.0
          %v646 = vmax.f32 %v630, 0.0
          %v647 = vmax.f32 %v631, 0.0
          %v648 = vmax.f32 %v632, 0.0
          %v649 = vmax.f32 %v633, 0.0
          %v650 = vmax.f32 %v634, 0.0
          %v651 = vmax.f32 %v635, 0.0
          %v652 = vmax.f32 %v636, 0.0
          %v653 = vmax.f32 %v637, 0.0
          %v654 = vmax.f32 %v638, 0.0
          %v655 = vmax.f32 %v639, 0.0
          %v656 = vmax.f32 %v640, 0.0
          %v657 = vmax.f32 %v641, 0.0
          %v658 = vmax.f32 %v642, 0.0
          %v659 = vmax.f32 %v643, 0.0
          %660 = vst [vmem:[%s252] sm:$0xff] %v644
          %661 = vst [vmem:[%s252 + $0x8] sm:$0xff] %v645
          %662 = vst [vmem:[%s252 + $0x10] sm:$0xff] %v646
          %663 = vst [vmem:[%s252 + $0x18] sm:$0xff] %v647
          %664 = vst [vmem:[%s252 + $0x20] sm:$0xff] %v648
          %665 = vst [vmem:[%s252 + $0x28] sm:$0xff] %v649
          %666 = vst [vmem:[%s252 + $0x30] sm:$0xff] %v650
          %667 = vst [vmem:[%s252 + $0x38] sm:$0xff] %v651
          %668 = vst [vmem:[%s252 + $0x40] sm:$0xff] %v652
          %669 = vst [vmem:[%s252 + $0x48] sm:$0xff] %v653
          %670 = vst [vmem:[%s252 + $0x50] sm:$0xff] %v654
          %671 = vst [vmem:[%s252 + $0x58] sm:$0xff] %v655
          %672 = vst [vmem:[%s252 + $0x60] sm:$0xff] %v656
          %673 = vst [vmem:[%s252 + $0x68] sm:$0xff] %v657
          %674 = vst [vmem:[%s252 + $0x70] sm:$0xff] %v658
          %675 = vst [vmem:[%s252 + $0x78] sm:$0xff] %v659
        $region48: #{tpu_custom_call.1} parent=31 // pred_fallthru
          _
        %s676 = sand.u32 %s132, 1
        %s677 = scalar_lea.sflag [#allocation4], %s676
        %s678 = sand.u32 %s132, 1
        %s679 = smul.addr %s678, 128
        %s680 = scalar_lea.vmem [#allocation7], %s679
        // Predicated region
        $region49: #{tpu_custom_call.1} parent=31 // pred_check
          %p681 = pneg %p142
        $region50: #{tpu_custom_call.1} parent=31 // pred_check_branch
          %683 = sbr.rel (%p681) target = $region52
        $region51: #{tpu_custom_call.1} parent=31 // pred_region
          %s684 = smul.u32 16, %s26
          %s686 = ssub.s32 2048, 2048
          %687 = vsyncadd %s677, %s686
          %s688 = smul.addr %s684, 2
          %s689 = sadd.s32 %s27, %s688
          %s690 = smul.addr %s689, 128
          %s691 = scalar_lea.hbm %s3, %s690
          %s692 = sshll.u32 %s680, 4
          %s693 = int_to_ptr.vmem [resolvable:$true] %s692
          %698 = dma.vmem_to_hbm [thread:$0]  %s693, 2048, %s691, %s677, 128, 256, 8
        $region52: #{tpu_custom_call.1} parent=31 // pred_fallthru
          _
      $region32: #{tpu_custom_call.1} parent=5 // pred_fallthru
        _
      %p699 = scmp.le.s32.totalorder 2, %s16
      // Predicated region
      $region53: #{tpu_custom_call.1} parent=5 // pred_check
        %p700 = pneg %p699
      $region54: #{tpu_custom_call.1} parent=5 // pred_check_branch
        %702 = sbr.rel (%p700) target = $region56
      $region55: #{tpu_custom_call.1} parent=5 // pred_region
        %s703 = ssub.s32 %s16, 2
        // Predicated region
        $region57: #{tpu_custom_call.1} parent=55 // pred_check
          %p704 = pneg %p148
        $region58: #{tpu_custom_call.1} parent=55 // pred_check_branch
          %706 = sbr.rel (%p704) target = $region60
        $region59: #{tpu_custom_call.1} parent=55 // pred_region
          %s707 = sand.u32 %s133, 1
          %s708 = scalar_lea.sflag [#allocation4], %s707
          %s709 = sand.u32 %s133, 1
          %s710 = smul.addr %s709, 128
          %s711 = scalar_lea.vmem [#allocation7], %s710
          %712 = dma.done %s708, 2048
        $region60: #{tpu_custom_call.1} parent=55 // pred_fallthru
          _
      $region56: #{tpu_custom_call.1} parent=5 // pred_fallthru
        _
    $region6: #{tpu_custom_call.1} parent=1 // loop_footer
      %s20 = sadd.s32 1, %s16
    $region7: #{tpu_custom_call.1} parent=1 // loop_footer_branch
      %15 = sbr.rel target = $region3
    $region8: #{tpu_custom_call.1} parent=1 // loop_exit
      _
    %713 = vsyncpa [#allocation3], 1
    %s714 = scalar_lea.sflag [#allocation3], 1
    %715 = vsyncpa %s714, 1
    %716 = vsyncpa [#allocation6], 1
    %s717 = scalar_lea.sflag [#allocation6], 1
    %718 = vsyncpa %s717, 1
    %719 = vsyncpa [#allocation4], 1
    %s720 = scalar_lea.sflag [#allocation4], 1
    %721 = vsyncpa %s720, 1

</llo_original>
